<compile_context>
chip_gen: v6e
topology: v6e:2x2x1
jax: 0.10.0
libtpu: 0.0.40
codegen_flags: <defaults>
</compile_context>

<pallas_src>
import jax
import jax.numpy as jnp
from jax.experimental import pallas as pl
from jax.experimental.pallas import tpu as pltpu

_LANES = 128               # vreg lane width
_SUBLANES_32BIT = 8        # vreg sublane height for 32-bit dtypes
_MAX_TILE_ROWS = 8192      # 8192 x 128 x 4B = 4 MiB f32 per tile
_MIN_PALLAS_ELEMENTS = 65536  # below this, plain JAX FMA beats a kernel launch


def _linear_kernel(w_ref, b_ref, x_ref, o_ref):
    # w_ref, b_ref: (1, 1) scalars in SMEM; x_ref/o_ref: (tile_rows, 128) in VMEM.
    w = w_ref[0, 0]
    b = b_ref[0, 0]
    # Pure VPU multiply-add; scalar broadcast is free inside the vector op.
    o_ref[...] = x_ref[...] * w + b


def linear_1x1(x, weight, bias, *,
               max_tile_rows=_MAX_TILE_ROWS,
               min_pallas_elements=_MIN_PALLAS_ELEMENTS):
    """x: (B, 1), weight: (1, 1), bias: (1,) -> (B, 1), all in x.dtype."""
    B = x.shape[0]
    dtype = x.dtype
    w = weight.astype(dtype)
    b = bias.astype(dtype)
    n = B  # in_features == 1

    # ---- small-batch bypass: launch overhead >> work, let XLA fuse the FMA --
    if n < min_pallas_elements:
        return x * w.reshape(1, 1) + b.reshape(1, 1)

    # ---- dtype-aware sublane granularity (8 f32, 16 bf16, 32 int8) ---------
    itemsize = jnp.dtype(dtype).itemsize
    sublanes = _SUBLANES_32BIT * max(1, 4 // itemsize)

    # ---- lane-dense view, padded only to the next (sublanes x 128) boundary -
    flat = x.reshape(-1)                                   # (B,)
    rows = pl.cdiv(n, _LANES)
    rows_al = ((rows + sublanes - 1) // sublanes) * sublanes
    padded_n = rows_al * _LANES
    if padded_n != n:
        flat = jnp.pad(flat, (0, padded_n - n))
    x2d = flat.reshape(rows_al, _LANES)

    # ---- block size: as large as possible, multiple of the sublane height ---
    tile_rows = min(max_tile_rows, rows_al)
    tile_rows = max(sublanes, (tile_rows // sublanes) * sublanes)
    grid = (pl.cdiv(rows_al, tile_rows),)   # Pallas masks the partial last block

    # ---- scalars for SMEM ----------------------------------------------------
    w2d = w.reshape(1, 1)
    b2d = b.reshape(1, 1)

    out2d = pl.pallas_call(
        _linear_kernel,
        out_shape=jax.ShapeDtypeStruct((rows_al, _LANES), dtype),
        grid_spec=pltpu.PrefetchScalarGridSpec(
            num_scalar_prefetch=0,
            grid=grid,
            in_specs=[
                pl.BlockSpec(memory_space=pltpu.MemorySpace.SMEM),  # weight scalar
                pl.BlockSpec(memory_space=pltpu.MemorySpace.SMEM),  # bias scalar
                pl.BlockSpec((tile_rows, _LANES), lambda i: (i, 0)),
            ],
            out_specs=pl.BlockSpec((tile_rows, _LANES), lambda i: (i, 0)),
        ),
        compiler_params=pltpu.CompilerParams(
            dimension_semantics=("parallel",),
            # 2 x (4 MiB in + 4 MiB out) double-buffered = 16 MiB; raise v5e's
            # 16 MiB default scoped limit, no-op on v6e/v7x (32 MiB default).
            vmem_limit_bytes=32 << 20,
        ),
    )(w2d, b2d, x2d)

    # drop the (at most 1023-element) pad and restore the (B, 1) PyTorch layout
    out = out2d.reshape(-1)
    if padded_n != n:
        out = out[:n]
    return out.reshape(B, 1)


if __name__ == "__main__":
    key = jax.random.PRNGKey(0)
    kx, kw, kb = jax.random.split(key, 3)

    # nn.Linear(1, 1) init: W ~ U(-1, 1), b ~ U(-1, 1) since fan_in = 1.
    weight = jax.random.uniform(kw, (1, 1), jnp.float32, minval=-1.0, maxval=1.0)
    bias = jax.random.uniform(kb, (1,), jnp.float32, minval=-1.0, maxval=1.0)

    def ref(xx):
        return xx @ weight.T + bias

    # 1) nominal small batch (B=8, features=1): fast bypass path.
    x_small = jax.random.normal(kx, (8, 1), jnp.float32)
    out_small = linear_1x1(x_small, weight, bias)
    jax.block_until_ready(out_small)
    assert out_small.shape == (8, 1)
    assert jnp.allclose(out_small, ref(x_small), atol=1e-6, rtol=1e-6)

    # 2) Pallas path with an odd batch (exercises pad + trailing slice).
    x_odd = jax.random.normal(kx, (333, 1), jnp.float32)
    out_odd = linear_1x1(x_odd, weight, bias, min_pallas_elements=0)
    jax.block_until_ready(out_odd)
    assert jnp.allclose(out_odd, ref(x_odd), atol=1e-6, rtol=1e-6)

    # 3) multi-step grid (small data, tiny tile override).
    x_grid = jax.random.normal(kx, (4096, 1), jnp.float32)
    out_grid = linear_1x1(x_grid, weight, bias,
                          max_tile_rows=8, min_pallas_elements=0)
    jax.block_until_ready(out_grid)
    assert jnp.allclose(out_grid, ref(x_grid), atol=1e-6, rtol=1e-6)

    # 4) partial final block (rows not a multiple of tile_rows).
    x_part = jax.random.normal(kx, (3000, 1), jnp.float32)
    out_part = linear_1x1(x_part, weight, bias,
                          max_tile_rows=16, min_pallas_elements=0)
    jax.block_until_ready(out_part)
    assert jnp.allclose(out_part, ref(x_part), atol=1e-6, rtol=1e-6)

    print("KERNEL_OK")
</pallas_src>

<mosaic_0001>
module attributes {stable_mosaic.version = 11 : i64} {
  func.func @_linear_kernel(%arg0: i32, %arg1: memref<1x1xf32, #tpu.memory_space<smem>>, %arg2: memref<1x1xf32, #tpu.memory_space<smem>>, %arg3: memref<8x128xf32, #tpu.memory_space<vmem>>, %arg4: memref<8x128xf32, #tpu.memory_space<vmem>>) attributes {dimension_semantics = [#tpu.dimension_semantics<parallel>], iteration_bounds = array<i64: 1>, scalar_prefetch = 0 : i64, scratch_operands = 0 : i64, tpu.core_type = #tpu.core_type<tc>, window_params = [{transform_indices = @transform_0, window_bounds = array<i64: 1, 1>}, {transform_indices = @transform_1, window_bounds = array<i64: 1, 1>}, {transform_indices = @transform_2, window_bounds = array<i64: 8, 128>}, {transform_indices = @transform_3, window_bounds = array<i64: 8, 128>}]} {
    %c0 = arith.constant 0 : index
    %c0_0 = arith.constant 0 : index
    %0 = memref.load %arg1[%c0, %c0_0] : memref<1x1xf32, #tpu.memory_space<smem>>
    %c0_1 = arith.constant 0 : index
    %c0_2 = arith.constant 0 : index
    %1 = memref.load %arg2[%c0_1, %c0_2] : memref<1x1xf32, #tpu.memory_space<smem>>
    %c0_3 = arith.constant 0 : index
    %c0_4 = arith.constant 0 : index
    %2 = vector.load %arg3[%c0_3, %c0_4] : memref<8x128xf32, #tpu.memory_space<vmem>>, vector<8x128xf32>
    %3 = vector.broadcast %0 : f32 to vector<8x128xf32>
    %4 = arith.mulf %2, %3 : vector<8x128xf32>
    %5 = vector.broadcast %1 : f32 to vector<8x128xf32>
    %6 = arith.addf %4, %5 : vector<8x128xf32>
    %c0_5 = arith.constant 0 : index
    %c0_6 = arith.constant 0 : index
    %7 = vector.load %arg4[%c0_5, %c0_6] : memref<8x128xf32, #tpu.memory_space<vmem>>, vector<8x128xf32>
    tpu.vector_store %arg4[%c0_5, %c0_6], %6 {strides = array<i32>} : memref<8x128xf32, #tpu.memory_space<vmem>>, vector<8x128xf32>,
    return
  }
  func.func @transform_0(%arg0: i32) -> (i32, i32) {
    %c0_i32 = arith.constant 0 : i32
    %c0_i32_0 = arith.constant 0 : i32
    %c0_i32_1 = arith.constant 0 : i32
    return %c0_i32, %c0_i32_0 : i32, i32
  }
  func.func @transform_1(%arg0: i32) -> (i32, i32) {
    %c0_i32 = arith.constant 0 : i32
    %c0_i32_0 = arith.constant 0 : i32
    %c0_i32_1 = arith.constant 0 : i32
    return %c0_i32, %c0_i32_0 : i32, i32
  }
  func.func @transform_2(%arg0: i32) -> (i32, i32) {
    %c0_i32 = arith.constant 0 : i32
    %c0_i32_0 = arith.constant 0 : i32
    return %arg0, %c0_i32 : i32, i32
  }
  func.func @transform_3(%arg0: i32) -> (i32, i32) {
    %c0_i32 = arith.constant 0 : i32
    %c0_i32_0 = arith.constant 0 : i32
    return %arg0, %c0_i32 : i32, i32
  }
}

</mosaic_0001>

<llo_original>
// kernel: tpu_custom_call.1
$region0: #{tpu_custom_call.1}
  #allocation0 [shape = 'u32[]', space=smem, size = 0x4, offset = 0x4, fixed_abs, tag = 'smem constant byte address 0x4 - core index']
  #allocation1 [shape = 'u32[144,128]{1,0:T(1,128)}', space=vmem, size = 0x12000, scoped, tag = 'internal scratch']
  #allocation2 [shape = 'f32[1,1]{1,0:T(1,128)S(6)}', space=smem, size = 0x200, scoped, tag = 'scoped memory for tpu_custom_call.1']
  #allocation3 [shape = 'f32[1,1]{1,0:T(1,128)S(6)}', space=smem, size = 0x200, scoped, tag = 'scoped memory for tpu_custom_call.1']
  %s0 = inlined_call_operand.<no memory space> [shape: f32[1,1], index: 0, kind: input, shape index: {}]
  %s1 = inlined_call_operand.<no memory space> [shape: f32[1,1], index: 1, kind: input, shape index: {}]
  %s2 = inlined_call_operand.hbm [shape: f32[8,128], index: 2, kind: input, shape index: {}]
  %s3 = inlined_call_operand.hbm [shape: f32[8,128], index: 3, kind: output, shape index: {}]
  %s4 = sld [smem:[#allocation0]]
  $region26: #{tpu_custom_call.1} parent=0
    _
  %s6 = ssub.s32 1, %s4
  %s7 = scalar_select 0, %s6, %s4
  %8 = sst [smem:[#allocation2]] %s0
  %9 = sst [smem:[#allocation3]] %s1
  $region1: #{tpu_custom_call.1} parent=0
    #allocation4 [shape = 'u8[4096]{0}', space=vmem, size = 0x1000, scoped, tag = 'input window, operand 2, single buffered']
    #allocation5 [shape = 's32[1]{0}', space=sflag, size = 0x4, scoped, tag = 'scoped memory for tpu_custom_call.1']
    #allocation6 [shape = 's32[1]{0}', space=sflag, size = 0x4, scoped, tag = 'scoped memory for tpu_custom_call.1']
    #allocation7 [shape = 'u8[4096]{0}', space=vmem, size = 0x1000, scoped, tag = 'output window, operand 0, single buffered']
    %10 = vsyncpa [#allocation5], 0
    %11 = vsyncpa [#allocation6], 0
    // Predicated region
    $region2: #{tpu_custom_call.1} parent=1 // pred_check
      _
    $region3: #{tpu_custom_call.1} parent=1 // pred_check_branch
      %13 = sbr.rel (0) target = $region5
    $region4: #{tpu_custom_call.1} parent=1 // pred_region
      _
    $region5: #{tpu_custom_call.1} parent=1 // pred_fallthru
      _
    // Predicated region
    $region6: #{tpu_custom_call.1} parent=1 // pred_check
      _
    $region7: #{tpu_custom_call.1} parent=1 // pred_check_branch
      %15 = sbr.rel (0) target = $region9
    $region8: #{tpu_custom_call.1} parent=1 // pred_region
      _
    $region9: #{tpu_custom_call.1} parent=1 // pred_fallthru
      _
    // Predicated region
    $region10: #{tpu_custom_call.1} parent=1 // pred_check
      _
    $region11: #{tpu_custom_call.1} parent=1 // pred_check_branch
      %17 = sbr.rel (0) target = $region13
    $region12: #{tpu_custom_call.1} parent=1 // pred_region
      %s19 = ssub.s32 128, 128
      %20 = vsyncadd [#allocation5], %s19
      %s22 = sshll.u32 [#allocation4], 4
      %s23 = int_to_ptr.vmem [resolvable:$true] %s22
      %25 = dma.hbm_to_vmem [thread:$0]  %s2, 128, %s23, [#allocation5]
    $region13: #{tpu_custom_call.1} parent=1 // pred_fallthru
      _
    // Predicated region
    $region14: #{tpu_custom_call.1} parent=1 // pred_check
      _
    $region15: #{tpu_custom_call.1} parent=1 // pred_check_branch
      %27 = sbr.rel (0) target = $region17
    $region16: #{tpu_custom_call.1} parent=1 // pred_region
      %28 = dma.done [#allocation5], 128
    $region17: #{tpu_custom_call.1} parent=1 // pred_fallthru
      _
    %s29 = sld [smem:[#allocation2]]
    %s30 = sld [smem:[#allocation3]]
    %v31 = vld [vmem:[#allocation4] sm:$0xff]
    %v32 = vstv %s29
    %v33 = vmul.f32 %v31, %v32
    %v34 = vstv %s30
    %v35 = vadd.f32 %v33, %v34
    %36 = vst [vmem:[#allocation7] sm:$0xff] %v35
    // Predicated region
    $region18: #{tpu_custom_call.1} parent=1 // pred_check
      _
    $region19: #{tpu_custom_call.1} parent=1 // pred_check_branch
      %38 = sbr.rel (0) target = $region21
    $region20: #{tpu_custom_call.1} parent=1 // pred_region
      %s40 = ssub.s32 128, 128
      %41 = vsyncadd [#allocation6], %s40
      %s43 = sshll.u32 [#allocation7], 4
      %s44 = int_to_ptr.vmem [resolvable:$true] %s43
      %46 = dma.vmem_to_hbm [thread:$0]  %s44, 128, %s3, [#allocation6]
    $region21: #{tpu_custom_call.1} parent=1 // pred_fallthru
      _
    // Predicated region
    $region22: #{tpu_custom_call.1} parent=1 // pred_check
      _
    $region23: #{tpu_custom_call.1} parent=1 // pred_check_branch
      %48 = sbr.rel (0) target = $region25
    $region24: #{tpu_custom_call.1} parent=1 // pred_region
      %49 = dma.done [#allocation6], 128
    $region25: #{tpu_custom_call.1} parent=1 // pred_fallthru
      _
    %50 = vsyncpa [#allocation5], 1
    %51 = vsyncpa [#allocation6], 1

</llo_original>
